<compile_context>
chip_gen: v7x
topology: tpu7x:2x2x1
jax: 0.10.0
libtpu: 0.0.40
codegen_flags: <defaults>
</compile_context>

<pallas_src>
import jax
import jax.numpy as jnp
from jax.experimental import pallas as pl
from jax.experimental.pallas import tpu as pltpu

BN_EPS = 1e-5


# --------------------------------------------------------------------------- tiling
def _vmem_capacity_bytes() -> int:
    try:
        return int(pltpu.get_tpu_info().vmem_capacity_bytes)
    except Exception:
        return 64 << 20  # conservative fallback == v7x per-TensorCore VMEM


def _choose_time_tiling(T, Cin, Cout, io_itemsize, vmem_budget, max_t_tile=None):
    """Return (t_tile, T_pad): lane-aligned time tile and padded time extent."""
    # Bytes resident per time column in the pass-2 pipeline:
    #   double-buffered x / res / out tiles (io dtype) + f32 matmul & elementwise temps.
    per_col = 2 * io_itemsize * (Cin + 2 * Cout) + 8 * Cout + 4 * Cin
    cap = (vmem_budget // per_col) // 128 * 128
    cap = max(128, min(8192, cap))
    if max_t_tile is not None:
        cap = max(128, min(cap, (max_t_tile // 128) * 128))
    t_pad = -(-T // 128) * 128            # round T up to a lane-aligned multiple
    if t_pad <= cap:
        return t_pad, t_pad               # single lane-dense tile along time
    for t in range(cap, 127, -128):       # largest multiple of 128 dividing t_pad
        if t_pad % t == 0:
            return t, t_pad
    return 128, t_pad                     # unreachable: t_pad is a multiple of 128


# --------------------------------------------------------------------------- kernels
def _stats_kernel(x_ref, sum_ref, gram_ref):
    """Pass 1: per-batch sum_x and Gram = x x^T, accumulated across time tiles."""
    @pl.when(pl.program_id(1) == 0)
    def _():
        sum_ref[...] = jnp.zeros_like(sum_ref)
        gram_ref[...] = jnp.zeros_like(gram_ref)

    x = x_ref[0]                                                     # (Cin, Tt)
    sum_ref[...] += jnp.sum(x.astype(jnp.float32), axis=1, keepdims=True)[None]
    gram_ref[...] += jax.lax.dot_general(
        x, x, dimension_numbers=(((1,), (1,)), ((), ())),
        preferred_element_type=jnp.float32)[None]


def _fused_kernel(w_ref, b_ref, x_ref, res_ref, o_ref):
    """Pass 2: y = W'@x + b' (BN folded in), add residual, ReLU.  Fully parallel."""
    y = jnp.dot(w_ref[...], x_ref[0].astype(jnp.float32),
                preferred_element_type=jnp.float32)                  # (Cout, Tt) f32
    z = y + b_ref[...] + res_ref[0].astype(jnp.float32)              # f32 VPU (v5e-safe)
    o_ref[0] = jnp.maximum(z, 0.0).astype(o_ref.dtype)


# --------------------------------------------------------------------------- wrapper
def shortcut_layer(input_tensor, output_tensor, conv_w, conv_b, bn_gamma, bn_beta,
                   *, io_dtype=jnp.bfloat16, max_t_tile=None):
    """input_tensor: (B, Cin, T), output_tensor: (B, Cout, T)  ->  (B, Cout, T)."""
    B, Cin, T = input_tensor.shape
    _, Cout, _ = output_tensor.shape
    del conv_b  # bias before training-mode BatchNorm is exactly cancelled by the mean

    w = conv_w.reshape(Cout, Cin).astype(jnp.float32)
    io_itemsize = jnp.dtype(io_dtype).itemsize

    vmem_cap = _vmem_capacity_bytes()
    t_tile, T_pad = _choose_time_tiling(T, Cin, Cout, io_itemsize, vmem_cap // 3,
                                        max_t_tile=max_t_tile)
    grid = (B, T_pad // t_tile)

    per_col = 2 * io_itemsize * (Cin + 2 * Cout) + 8 * Cout + 4 * Cin
    vmem_needed = per_col * t_tile + 8 * Cout * Cin + (2 << 20)
    vmem_limit = int(min(vmem_cap * 9 // 10, max(2 * vmem_needed, 32 << 20)))

    # bf16 (default) I/O halves HBM traffic; this is a no-op when the surrounding
    # model already keeps activations in io_dtype.
    x_io = input_tensor.astype(io_dtype)
    res_io = output_tensor.astype(io_dtype)
    if T_pad != T:
        pad = ((0, 0), (0, 0), (0, T_pad - T))
        x_io = jnp.pad(x_io, pad)      # zeros contribute nothing to sum_x / Gram
        res_io = jnp.pad(res_io, pad)  # padded output columns are sliced off below

    w_spec = pl.BlockSpec((Cout, Cin), lambda b, t: (0, 0))
    bias_spec = pl.BlockSpec((Cout, 1), lambda b, t: (0, 0))
    x_spec = pl.BlockSpec((1, Cin, t_tile), lambda b, t: (b, 0, t))
    res_spec = pl.BlockSpec((1, Cout, t_tile), lambda b, t: (b, 0, t))
    out_spec = pl.BlockSpec((1, Cout, t_tile), lambda b, t: (b, 0, t))
    sum_spec = pl.BlockSpec((1, Cin, 1), lambda b, t: (b, 0, 0))
    gram_spec = pl.BlockSpec((1, Cin, Cin), lambda b, t: (b, 0, 0))

    # ---- pass 1: input statistics, per-batch accumulators (megacore-shardable) -----
    sum_xb, gram_b = pl.pallas_call(
        _stats_kernel,
        out_shape=(jax.ShapeDtypeStruct((B, Cin, 1), jnp.float32),
                   jax.ShapeDtypeStruct((B, Cin, Cin), jnp.float32)),
        grid=grid,
        in_specs=[x_spec],
        out_specs=(sum_spec, gram_spec),
        compiler_params=pltpu.CompilerParams(
            dimension_semantics=("parallel", "arbitrary"),
            vmem_limit_bytes=vmem_limit),
        cost_estimate=pl.CostEstimate(
            flops=2 * B * T_pad * Cin * Cin + B * T_pad * Cin,
            transcendentals=0,
            bytes_accessed=io_itemsize * B * T_pad * Cin),
    )(x_io)

    # ---- fold BN batch stats of y = W@x into the conv (tiny host-side math) --------
    n = B * T                                                 # true count (padding excluded)
    sum_x = jnp.sum(sum_xb, axis=0)                           # (Cin, 1)
    gram = jnp.sum(gram_b, axis=0)                            # (Cin, Cin)
    sum_y = w @ sum_x                                         # (Cout, 1)
    sumsq_y = jnp.sum((w @ gram) * w, axis=1, keepdims=True)  # (Cout, 1)
    mean = sum_y / n
    var = jnp.maximum(sumsq_y / n - mean * mean, 0.0)         # clamp E[y^2]-E[y]^2 cancellation
    scale = bn_gamma.reshape(Cout, 1).astype(jnp.float32) * jax.lax.rsqrt(var + BN_EPS)
    w_folded = w * scale                                      # (Cout, Cin)
    b_folded = bn_beta.reshape(Cout, 1).astype(jnp.float32) - mean * scale

    # ---- pass 2: matmul + bias + residual + ReLU, tiled & fully parallel -----------
    # TODO(synk): inside a jit caller, alias the residual onto the output with
    # input_output_aliases={3: 0} (footprint only); add pipeline_mode=pl.Buffered(3)
    # on x/res if a profile shows exposed DMA.
    out = pl.pallas_call(
        _fused_kernel,
        out_shape=jax.ShapeDtypeStruct((B, Cout, T_pad), io_dtype),
        grid=grid,
        in_specs=[w_spec, bias_spec, x_spec, res_spec],
        out_specs=out_spec,
        compiler_params=pltpu.CompilerParams(
            dimension_semantics=("parallel", "parallel"),
            vmem_limit_bytes=vmem_limit),
        cost_estimate=pl.CostEstimate(
            flops=2 * B * T_pad * Cin * Cout + 3 * B * T_pad * Cout,
            transcendentals=0,
            bytes_accessed=io_itemsize * B * T_pad * (Cin + 2 * Cout)),
    )(w_folded, b_folded, x_io, res_io)

    if T_pad != T:
        out = out[:, :, :T]
    return out


# --------------------------------------------------------------------------- reference
def _reference(input_tensor, output_tensor, conv_w, conv_b, bn_gamma, bn_beta):
    """Pure-JAX reference matching the PyTorch training-mode forward (bias included)."""
    Cout = conv_w.shape[0]
    w = conv_w.reshape(Cout, conv_w.shape[1])
    y = jnp.einsum("bct,oc->bot", input_tensor, w) + conv_b[None, :, None]
    mean = jnp.mean(y, axis=(0, 2), keepdims=True)
    var = jnp.mean((y - mean) ** 2, axis=(0, 2), keepdims=True)
    y_bn = bn_gamma[None, :, None] * (y - mean) / jnp.sqrt(var + BN_EPS) \
        + bn_beta[None, :, None]
    return jnp.maximum(y_bn + output_tensor, 0.0)


def _run_case(key, B, Cin, Cout, T, io_dtype, tol, max_t_tile=None):
    k_x, k_r, k_w, k_b, k_g, k_be = jax.random.split(key, 6)
    input_tensor = jax.random.normal(k_x, (B, Cin, T), dtype=jnp.float32)
    output_tensor = jax.random.normal(k_r, (B, Cout, T), dtype=jnp.float32)
    conv_w = jax.random.normal(k_w, (Cout, Cin, 1), dtype=jnp.float32) * 0.1
    conv_b = jax.random.normal(k_b, (Cout,), dtype=jnp.float32) * 0.1
    bn_gamma = jnp.ones((Cout,), jnp.float32) + 0.01 * jax.random.normal(k_g, (Cout,))
    bn_beta = 0.01 * jax.random.normal(k_be, (Cout,), dtype=jnp.float32)

    out = shortcut_layer(input_tensor, output_tensor, conv_w, conv_b, bn_gamma, bn_beta,
                         io_dtype=io_dtype, max_t_tile=max_t_tile)
    out = jax.block_until_ready(out)

    ref = _reference(input_tensor, output_tensor, conv_w, conv_b, bn_gamma, bn_beta)
    assert out.shape == (B, Cout, T), f"bad shape {out.shape}"
    assert jnp.allclose(out.astype(jnp.float32), ref, atol=tol, rtol=tol), (
        f"mismatch vs reference (B={B} Cin={Cin} Cout={Cout} T={T} io={jnp.dtype(io_dtype).name})")


if __name__ == "__main__":
    key = jax.random.PRNGKey(0)
    k1, k2, k3 = jax.random.split(key, 3)

    # f32 I/O, tiny T (zero-padding to one 128-lane tile): validates the algorithm tightly.
    _run_case(k1, B=2, Cin=4, Cout=8, T=16, io_dtype=jnp.float32, tol=1e-3)
    # bf16 I/O (default fast path), lane-aligned T, forced multi-tile time reduction.
    _run_case(k2, B=3, Cin=4, Cout=8, T=384, io_dtype=jnp.bfloat16, tol=6e-2, max_t_tile=128)
    # bf16 I/O, T not a multiple of 128 (padding path) with more channels.
    _run_case(k3, B=2, Cin=16, Cout=32, T=200, io_dtype=jnp.bfloat16, tol=6e-2)

    print("KERNEL_OK")
</pallas_src>

<mosaic_0001>
module attributes {stable_mosaic.version = 11 : i64} {
  func.func @_stats_kernel(%arg0: i32, %arg1: i32, %arg2: memref<1x4x128xf32, #tpu.memory_space<vmem>>, %arg3: memref<1x4x1xf32, #tpu.memory_space<vmem>>, %arg4: memref<1x4x4xf32, #tpu.memory_space<vmem>>) attributes {dimension_semantics = [#tpu.dimension_semantics<parallel>, #tpu.dimension_semantics<arbitrary>], iteration_bounds = array<i64: 2, 1>, scalar_prefetch = 0 : i64, scratch_operands = 0 : i64, tpu.core_type = #tpu.core_type<tc>, window_params = [{transform_indices = @transform_0, window_bounds = array<i64: 1, 4, 128>}, {transform_indices = @transform_1, window_bounds = array<i64: 1, 4, 1>}, {transform_indices = @transform_2, window_bounds = array<i64: 1, 4, 4>}]} {
    %c0_i32 = arith.constant 0 : i32
    %0 = arith.cmpi eq, %arg1, %c0_i32 : i32
    %1 = arith.extui %0 : i1 to i32
    %c0_i32_0 = arith.constant 0 : i32
    %2 = arith.cmpi ne, %1, %c0_i32_0 : i32
    scf.if %2 {
      %cst_16 = arith.constant 0.000000e+00 : f32
      %16 = vector.broadcast %cst_16 : f32 to vector<1x4x1xf32>
      %c0_17 = arith.constant 0 : index
      %c0_18 = arith.constant 0 : index
      %c0_19 = arith.constant 0 : index
      %17 = vector.load %arg3[%c0_17, %c0_18, %c0_19] : memref<1x4x1xf32, #tpu.memory_space<vmem>>, vector<1x4x1xf32>
      tpu.vector_store %arg3[%c0_17, %c0_18, %c0_19], %16 {strides = array<i32>} : memref<1x4x1xf32, #tpu.memory_space<vmem>>, vector<1x4x1xf32>,
      %cst_20 = arith.constant 0.000000e+00 : f32
      %18 = vector.broadcast %cst_20 : f32 to vector<1x4x4xf32>
      %c0_21 = arith.constant 0 : index
      %c0_22 = arith.constant 0 : index
      %c0_23 = arith.constant 0 : index
      %19 = vector.load %arg4[%c0_21, %c0_22, %c0_23] : memref<1x4x4xf32, #tpu.memory_space<vmem>>, vector<1x4x4xf32>
      tpu.vector_store %arg4[%c0_21, %c0_22, %c0_23], %18 {strides = array<i32>} : memref<1x4x4xf32, #tpu.memory_space<vmem>>, vector<1x4x4xf32>,
    } else {
    }
    %c0 = arith.constant 0 : index
    %c0_1 = arith.constant 0 : index
    %c0_2 = arith.constant 0 : index
    %3 = vector.load %arg2[%c0, %c0_1, %c0_2] : memref<1x4x128xf32, #tpu.memory_space<vmem>>, vector<1x4x128xf32>
    %4 = vector.shape_cast %3 : vector<1x4x128xf32> to vector<4x128xf32>
    %c0_3 = arith.constant 0 : index
    %c0_4 = arith.constant 0 : index
    %c0_5 = arith.constant 0 : index
    %5 = vector.load %arg3[%c0_3, %c0_4, %c0_5] : memref<1x4x1xf32, #tpu.memory_space<vmem>>, vector<1x4x1xf32>
    %cst = arith.constant dense<0.000000e+00> : vector<4xf32>
    %6 = vector.multi_reduction <add>, %4, %cst [1] : vector<4x128xf32> to vector<4xf32>
    %7 = vector.shape_cast %6 : vector<4xf32> to vector<4x1xf32>
    %8 = vector.shape_cast %7 : vector<4x1xf32> to vector<1x4x1xf32>
    %9 = arith.addf %5, %8 : vector<1x4x1xf32>
    %c0_6 = arith.constant 0 : index
    %c0_7 = arith.constant 0 : index
    %c0_8 = arith.constant 0 : index
    %10 = vector.load %arg3[%c0_6, %c0_7, %c0_8] : memref<1x4x1xf32, #tpu.memory_space<vmem>>, vector<1x4x1xf32>
    tpu.vector_store %arg3[%c0_6, %c0_7, %c0_8], %9 {strides = array<i32>} : memref<1x4x1xf32, #tpu.memory_space<vmem>>, vector<1x4x1xf32>,
    %c0_9 = arith.constant 0 : index
    %c0_10 = arith.constant 0 : index
    %c0_11 = arith.constant 0 : index
    %11 = vector.load %arg4[%c0_9, %c0_10, %c0_11] : memref<1x4x4xf32, #tpu.memory_space<vmem>>, vector<1x4x4xf32>
    %cst_12 = arith.constant dense<0.000000e+00> : vector<4x4xf32>
    %12 = tpu.matmul %4, %4, %cst_12 {dimension_numbers = #tpu.dot_dimension_numbers<[1], [1], [0], [0], [0, 0, 1, 0], [], []>} : vector<4x128xf32>, vector<4x128xf32>, vector<4x4xf32> -> vector<4x4xf32>
    %13 = vector.shape_cast %12 : vector<4x4xf32> to vector<1x4x4xf32>
    %14 = arith.addf %11, %13 : vector<1x4x4xf32>
    %c0_13 = arith.constant 0 : index
    %c0_14 = arith.constant 0 : index
    %c0_15 = arith.constant 0 : index
    %15 = vector.load %arg4[%c0_13, %c0_14, %c0_15] : memref<1x4x4xf32, #tpu.memory_space<vmem>>, vector<1x4x4xf32>
    tpu.vector_store %arg4[%c0_13, %c0_14, %c0_15], %14 {strides = array<i32>} : memref<1x4x4xf32, #tpu.memory_space<vmem>>, vector<1x4x4xf32>,
    return
  }
  func.func @transform_0(%arg0: i32, %arg1: i32) -> (i32, i32, i32) {
    %c0_i32 = arith.constant 0 : i32
    %c0_i32_0 = arith.constant 0 : i32
    return %arg0, %c0_i32, %arg1 : i32, i32, i32
  }
  func.func @transform_1(%arg0: i32, %arg1: i32) -> (i32, i32, i32) {
    %c0_i32 = arith.constant 0 : i32
    %c0_i32_0 = arith.constant 0 : i32
    %c0_i32_1 = arith.constant 0 : i32
    return %arg0, %c0_i32, %c0_i32_0 : i32, i32, i32
  }
  func.func @transform_2(%arg0: i32, %arg1: i32) -> (i32, i32, i32) {
    %c0_i32 = arith.constant 0 : i32
    %c0_i32_0 = arith.constant 0 : i32
    %c0_i32_1 = arith.constant 0 : i32
    return %arg0, %c0_i32, %c0_i32_0 : i32, i32, i32
  }
}

</mosaic_0001>

<llo_original>
// kernel: tpu_custom_call.1
$region0: #{tpu_custom_call.1}
  #allocation0 [shape = 'u32[]', space=smem, size = 0x4, offset = 0x4, fixed_abs, tag = 'smem constant byte address 0x4 - core index']
  #allocation1 [shape = 'u32[144,128]{1,0:T(1,128)}', space=vmem, size = 0x12000, scoped, tag = 'internal scratch']
  %s0 = inlined_call_operand.hbm [shape: f32[2,4,128], index: 0, kind: input, shape index: {}]
  %s1 = inlined_call_operand.vmem [shape: f32[2,4,1], index: 1, kind: output, shape index: {0}]
  %s2 = inlined_call_operand.hbm [shape: f32[2,4,4], index: 2, kind: output, shape index: {1}]
  %3 = xla_tuple %s1, %s2
  %s4 = sld [smem:[#allocation0]]
  $region53: #{tpu_custom_call.1} parent=0
    _
  %s6 = ssub.s32 1, %s4
  %s7 = scalar_select 0, %s6, %s4
  $region1: #{tpu_custom_call.1} parent=0
    #allocation2 [shape = 'u8[4096]{0}', space=vmem, size = 0x1000, scoped, tag = 'input window, operand 0']
    #allocation3 [shape = 's32[2]{0}', space=sflag, size = 0x8, scoped, tag = 'scoped memory for tpu_custom_call.1']
    #allocation4 [shape = 's32[2]{0}', space=sflag, size = 0x8, scoped, tag = 'scoped memory for tpu_custom_call.1']
    #allocation5 [shape = 'u8[4096]{0}', space=vmem, size = 0x1000, scoped, tag = 'output window, operand 1']
    %8 = vsyncpa [#allocation3], 0
    %s9 = scalar_lea.sflag [#allocation3], 1
    %10 = vsyncpa %s9, 0
    %11 = vsyncpa [#allocation4], 0
    %s12 = scalar_lea.sflag [#allocation4], 1
    %13 = vsyncpa %s12, 0
    loop: start=0, step=1, limit=4
    $region2: #{tpu_custom_call.1} parent=1 // loop_pre_header
      _
    $region3: #{tpu_custom_call.1} parent=1 // loop_header
      %s15 = sphi 0, %s19
      %p16 = scmp.ge.s32.totalorder %s15, 4
      %s22 = sphi 0, %s34
      %s23 = sphi 0, %s30
      %s24 = sphi 0, %s22
      %s25 = sphi 0, %s23
      %s26 = sphi 0, %s24
      %s27 = sphi 0, %s25
      %s39 = sphi 0, %s41
      %s42 = sphi 0, %s39
      %s43 = sphi 0, %s42
      %s59 = sphi 0, %s43
      %s65 = sphi 0, %s67
      %s68 = sphi 0, %s65
      %s69 = sphi 0, %s68
      %s85 = sphi 0, %s69
      %s91 = sphi 0, %s93
      %s94 = sphi 0, %s91
      %s95 = sphi 0, %s94
      %s111 = sphi 0, %s95
    $region4: #{tpu_custom_call.1} parent=1 // loop_header_branch
      %18 = sbr.rel (%p16) target = $region8
    $region5: #{tpu_custom_call.1} parent=1 // loop_body
      %s20 = ssub.s32 %s15, 1
      %s21 = ssub.s32 %s15, 2
      %s28 = sadd.s32 1, %s23
      %p29 = scmp.ge.s32.totalorder %s28, 1
      %s30 = scalar_select %p29, 0, %s28
      %s31 = sadd.s32 1, %s22
      %s32 = scalar_select %p29, %s31, %s22
      %p33 = scmp.ge.s32.totalorder %s32, 2
      %s34 = scalar_select %p33, 0, %s32
      %s35 = ssub.s32 %s22, %s34
      %s36 = ssub.s32 %s23, %s30
      %s37 = sor.u32 %s35, %s36
      %p38 = scmp.eq.s32.totalorder %s37, 0
      %s40 = sadd.s32 %s39, 1
      %s41 = scalar_select %p38, %s39, %s40
      %p44 = pneg %p38
      %p45 = scmp.eq.s32.totalorder %s15, 1
      %p46 = por %p44, %p45
      %p47 = scmp.ne.s32.totalorder %s39, %s42
      %p48 = scmp.eq.s32.totalorder %s15, 0
      %p49 = por %p47, %p48
      %p50 = scmp.ne.s32.totalorder %s39, %s42
      %p51 = scmp.eq.s32.totalorder %s20, 1
      %p52 = por %p50, %p51
      %p53 = scmp.ne.s32.totalorder %s42, %s43
      %p54 = scmp.eq.s32.totalorder %s20, 0
      %p55 = por %p53, %p54
      %p56 = scmp.ne.s32.totalorder %s42, %s43
      %p57 = scmp.eq.s32.totalorder %s21, 1
      %p58 = por %p56, %p57
      %p60 = scmp.ne.s32.totalorder %s43, %s59
      %p61 = scmp.eq.s32.totalorder %s21, 0
      %p62 = por %p60, %p61
      %s63 = ssub.s32 %s22, %s34
      %p64 = scmp.eq.s32.totalorder %s63, 0
      %s66 = sadd.s32 %s65, 1
      %s67 = scalar_select %p64, %s65, %s66
      %p70 = pneg %p64
      %p71 = scmp.eq.s32.totalorder %s15, 1
      %p72 = por %p70, %p71
      %p73 = scmp.ne.s32.totalorder %s65, %s68
      %p74 = scmp.eq.s32.totalorder %s15, 0
      %p75 = por %p73, %p74
      %p76 = scmp.ne.s32.totalorder %s65, %s68
      %p77 = scmp.eq.s32.totalorder %s20, 1
      %p78 = por %p76, %p77
      %p79 = scmp.ne.s32.totalorder %s68, %s69
      %p80 = scmp.eq.s32.totalorder %s20, 0
      %p81 = por %p79, %p80
      %p82 = scmp.ne.s32.totalorder %s68, %s69
      %p83 = scmp.eq.s32.totalorder %s21, 1
      %p84 = por %p82, %p83
      %p86 = scmp.ne.s32.totalorder %s69, %s85
      %p87 = scmp.eq.s32.totalorder %s21, 0
      %p88 = por %p86, %p87
      %s89 = ssub.s32 %s22, %s34
      %p90 = scmp.eq.s32.totalorder %s89, 0
      %s92 = sadd.s32 %s91, 1
      %s93 = scalar_select %p90, %s91, %s92
      %p96 = pneg %p90
      %p97 = scmp.eq.s32.totalorder %s15, 1
      %p98 = por %p96, %p97
      %p99 = scmp.ne.s32.totalorder %s91, %s94
      %p100 = scmp.eq.s32.totalorder %s15, 0
      %p101 = por %p99, %p100
      %p102 = scmp.ne.s32.totalorder %s91, %s94
      %p103 = scmp.eq.s32.totalorder %s20, 1
      %p104 = por %p102, %p103
      %p105 = scmp.ne.s32.totalorder %s94, %s95
      %p106 = scmp.eq.s32.totalorder %s20, 0
      %p107 = por %p105, %p106
      %p108 = scmp.ne.s32.totalorder %s94, %s95
      %p109 = scmp.eq.s32.totalorder %s21, 1
      %p110 = por %p108, %p109
      %p112 = scmp.ne.s32.totalorder %s95, %s111
      %p113 = scmp.eq.s32.totalorder %s21, 0
      %p114 = por %p112, %p113
      %p115 = scmp.le.s32.totalorder 1, %s15
      %p116 = scmp.lt.s32.totalorder %s15, 3
      %p117 = pnand %p115, %p116
      %p118 = pneg %p117
      // Predicated region
      $region9: #{tpu_custom_call.1} parent=5 // pred_check
        _
      $region10: #{tpu_custom_call.1} parent=5 // pred_check_branch
        %120 = sbr.rel (%p117) target = $region12
      $region11: #{tpu_custom_call.1} parent=5 // pred_region
        %s121 = ssub.s32 %s15, 1
      $region12: #{tpu_custom_call.1} parent=5 // pred_fallthru
        _
      %p122 = scmp.lt.s32.totalorder %s15, 2
      // Predicated region
      $region13: #{tpu_custom_call.1} parent=5 // pred_check
        %p123 = pneg %p122
      $region14: #{tpu_custom_call.1} parent=5 // pred_check_branch
        %125 = sbr.rel (%p123) target = $region16
      $region15: #{tpu_custom_call.1} parent=5 // pred_region
        // Predicated region
        $region17: #{tpu_custom_call.1} parent=15 // pred_check
          %p126 = pneg %p49
        $region18: #{tpu_custom_call.1} parent=15 // pred_check_branch
          %128 = sbr.rel (%p126) target = $region20
        $region19: #{tpu_custom_call.1} parent=15 // pred_region
          %s129 = sand.u32 %s39, 1
          %s130 = scalar_lea.sflag [#allocation3], %s129
          %s131 = sand.u32 %s39, 1
          %s132 = smul.addr %s131, 4
          %s133 = scalar_lea.vmem [#allocation2], %s132
          %s135 = ssub.s32 64, 64
          %136 = vsyncadd %s130, %s135
          %s137 = sadd.s32 %s23, %s22
          %s138 = smul.addr %s137, 64
          %s139 = scalar_lea.hbm %s0, %s138
          %s141 = sshll.u32 %s133, 4
          %s142 = int_to_ptr.vmem [resolvable:$true] %s141
          %144 = dma.hbm_to_vmem [thread:$0]  %s139, 64, %s142, %s130
        $region20: #{tpu_custom_call.1} parent=15 // pred_fallthru
          _
      $region16: #{tpu_custom_call.1} parent=5 // pred_fallthru
        _
      %p145 = scmp.le.s32.totalorder 1, %s15
      %p146 = scmp.lt.s32.totalorder %s15, 3
      %p147 = pnand %p145, %p146
      %p148 = pneg %p147
      // Predicated region
      $region21: #{tpu_custom_call.1} parent=5 // pred_check
        _
      $region22: #{tpu_custom_call.1} parent=5 // pred_check_branch
        %150 = sbr.rel (%p147) target = $region24
      $region23: #{tpu_custom_call.1} parent=5 // pred_region
        %s151 = ssub.s32 %s15, 1
        %s152 = sand.u32 %s42, 1
        %s153 = scalar_lea.sflag [#allocation3], %s152
        %s154 = sand.u32 %s42, 1
        %s155 = smul.addr %s154, 4
        %s156 = scalar_lea.vmem [#allocation2], %s155
        // Predicated region
        $region25: #{tpu_custom_call.1} parent=23 // pred_check
          %p157 = pneg %p55
        $region26: #{tpu_custom_call.1} parent=23 // pred_check_branch
          %159 = sbr.rel (%p157) target = $region28
        $region27: #{tpu_custom_call.1} parent=23 // pred_region
          %160 = dma.done %s153, 64
        $region28: #{tpu_custom_call.1} parent=23 // pred_fallthru
          _
        %s161 = sand.u32 %s42, 1
        %s162 = scalar_lea.sflag [#allocation3], %s161
        %s163 = sand.u32 %s42, 1
        %s164 = smul.addr %s163, 4
        %s165 = scalar_lea.vmem [#allocation2], %s164
        %p166 = pneg %p55
        %p167 = pneg %p52
        %p168 = pneg %p81
        %p169 = pneg %p78
        %p170 = scmp.lt.s32.totalorder %s24, 1
        %s171 = scalar_select %p170, %s24, 1
        %s172 = smul.addr %s171, 4
        %s173 = scalar_lea.vmem %s1, %s172
        %p174 = pneg %p107
        %p175 = pneg %p104
        %s176 = sand.u32 %s94, 1
        %s177 = scalar_lea.sflag [#allocation4], %s176
        %s178 = sand.u32 %s94, 1
        %s179 = smul.addr %s178, 4
        %s180 = scalar_lea.vmem [#allocation5], %s179
        %p181 = scmp.lt.s32.totalorder %s24, 1
        %s182 = scalar_select %p181, %s24, 1
        %s183 = smul.addr %s182, 4
        %s184 = scalar_lea.vmem %s1, %s183
        %p185 = scmp.eq.s32.totalorder %s25, 0
        // Predicated region
        $region29: #{tpu_custom_call.1} parent=23 // pred_check
          %p186 = pneg %p185
        $region30: #{tpu_custom_call.1} parent=23 // pred_check_branch
          %188 = sbr.rel (%p186) target = $region32
        $region31: #{tpu_custom_call.1} parent=23 // pred_region
          %vm189 = vcmask 3072
          %190 = vst.msk [vmem:[%s184] sm:$0xf] %vm189, 0.0
          %vm191 = vcmask 27648
          %192 = vst.msk [vmem:[%s180] sm:$0xf] %vm191, 0.0
        $region32: #{tpu_custom_call.1} parent=23 // pred_fallthru
          _
        %v193 = vld [vmem:[%s156] sm:$0xf]
        %v194 = vld [vmem:[%s184] sm:$0xf]
        %vm195 = vcmask 1043456
        %v196 = vsel %vm195, %v193, 0.0
        %197 = vadd.xlane.f32.xlu0 %v196
        %v198 = vpop.xlane.xlu0 %197
        %v199 = vadd.f32 %v194, %v198
        %vm200 = vcmask 3072
        %201 = vst.msk [vmem:[%s184] sm:$0xf] %vm200, %v199
        %v202 = vld [vmem:[%s180] sm:$0xf]
        %203 = vmatprep.subr.mxu0 0.0
        %204 = vmatpush1.xpose.msra.mxu0 %v193
        %205 = vmatprep.subr.mxu0 0.0
        %206 = vmatpush1.xpose.msra.mxu0 0.0
        %207 = vmatprep.subr.mxu0 0.0
        %208 = vmatpush1.xpose.msra.mxu0 0.0
        %209 = vmatprep.subr.mxu0 0.0
        %210 = vmatpush1.xpose.msra.mxu0 0.0
        %211 = vmatprep.subr.mxu0 0.0
        %212 = vmatpush1.xpose.msra.mxu0 0.0
        %213 = vmatprep.subr.mxu0 0.0
        %214 = vmatpush1.xpose.msra.mxu0 0.0
        %215 = vmatprep.subr.mxu0 0.0
        %216 = vmatpush1.xpose.msra.mxu0 0.0
        %217 = vmatprep.subr.mxu0 0.0
        %218 = vmatpush1.xpose.msra.mxu0 0.0
        %219 = vmatprep.subr.mxu0 0.0
        %220 = vmatpush1.xpose.msra.mxu0 0.0
        %221 = vmatprep.subr.mxu0 0.0
        %222 = vmatpush1.xpose.msra.mxu0 0.0
        %223 = vmatprep.subr.mxu0 0.0
        %224 = vmatpush1.xpose.msra.mxu0 0.0
        %225 = vmatprep.subr.mxu0 0.0
        %226 = vmatpush1.xpose.msra.mxu0 0.0
        %227 = vmatprep.subr.mxu0 0.0
        %228 = vmatpush1.xpose.msra.mxu0 0.0
        %229 = vmatprep.subr.mxu0 0.0
        %230 = vmatpush1.xpose.msra.mxu0 0.0
        %231 = vmatprep.subr.mxu0 0.0
        %232 = vmatpush1.xpose.msra.mxu0 0.0
        %233 = vmatprep.subr.mxu0 0.0
        %234 = vmatpush1.xpose.msra.mxu0 0.0
        %235 = vmatprep.subr.mxu0 0.0
        %236 = vmatpush1.xpose.msra.mxu0 0.0
        %237 = vmatprep.subr.mxu0 0.0
        %238 = vmatpush1.xpose.msra.mxu0 0.0
        %239 = vmatprep.subr.mxu0 0.0
        %240 = vmatpush1.xpose.msra.mxu0 0.0
        %241 = vmatprep.subr.mxu0 0.0
        %242 = vmatpush1.xpose.msra.mxu0 0.0
        %243 = vmatprep.subr.mxu0 0.0
        %244 = vmatpush1.xpose.msra.mxu0 0.0
        %245 = vmatprep.subr.mxu0 0.0
        %246 = vmatpush1.xpose.msra.mxu0 0.0
        %247 = vmatprep.subr.mxu0 0.0
        %248 = vmatpush1.xpose.msra.mxu0 0.0
        %249 = vmatprep.subr.mxu0 0.0
        %250 = vmatpush1.xpose.msra.mxu0 0.0
        %251 = vmatprep.subr.mxu0 0.0
        %252 = vmatpush1.xpose.msra.mxu0 0.0
        %253 = vmatprep.subr.mxu0 0.0
        %254 = vmatpush1.xpose.msra.mxu0 0.0
        %255 = vmatprep.subr.mxu0 0.0
        %256 = vmatpush1.xpose.msra.mxu0 0.0
        %257 = vmatprep.subr.mxu0 0.0
        %258 = vmatpush1.xpose.msra.mxu0 0.0
        %259 = vmatprep.subr.mxu0 0.0
        %260 = vmatpush1.xpose.msra.mxu0 0.0
        %261 = vmatprep.subr.mxu0 0.0
        %262 = vmatpush1.xpose.msra.mxu0 0.0
        %263 = vmatprep.subr.mxu0 0.0
        %264 = vmatpush1.xpose.msra.mxu0 0.0
        %265 = vmatprep.subr.mxu0 0.0
        %266 = vmatpush1.xpose.msra.mxu0 0.0
        %267 = vmatprep.mubr.f32.mxu0 0.0
        %268 = vmatmul.mubr.f32.gmra.mrb[0].mxu0 %v193
        %v269 = vpop.f32.mrb[0].mxu0
        %v270 = vadd.f32 0.0, %v269
        %v271 = vpop.f32.mrb[0].mxu0
        %272 = vdwg.mxu0
        %v273 = vadd.f32 %v202, %v270
        %vm274 = vcmask 27648
        %275 = vst.msk [vmem:[%s180] sm:$0xf] %vm274, %v273
        %p276 = scmp.lt.s32.totalorder %s24, 1
        %s277 = scalar_select %p276, %s24, 1
        %s278 = smul.addr %s277, 4
        %s279 = scalar_lea.vmem %s1, %s278
        %s280 = sand.u32 %s94, 1
        %s281 = scalar_lea.sflag [#allocation4], %s280
        %s282 = sand.u32 %s94, 1
        %s283 = smul.addr %s282, 4
        %s284 = scalar_lea.vmem [#allocation5], %s283
        // Predicated region
        $region33: #{tpu_custom_call.1} parent=23 // pred_check
          %p285 = pneg %p78
        $region34: #{tpu_custom_call.1} parent=23 // pred_check_branch
          %287 = sbr.rel (%p285) target = $region36
        $region35: #{tpu_custom_call.1} parent=23 // pred_region
          _
        $region36: #{tpu_custom_call.1} parent=23 // pred_fallthru
          _
        // Predicated region
        $region37: #{tpu_custom_call.1} parent=23 // pred_check
          %p288 = pneg %p104
        $region38: #{tpu_custom_call.1} parent=23 // pred_check_branch
          %290 = sbr.rel (%p288) target = $region40
        $region39: #{tpu_custom_call.1} parent=23 // pred_region
          %s292 = ssub.s32 64, 64
          %293 = vsyncadd %s281, %s292
          %s294 = smul.addr %s24, 64
          %s295 = scalar_lea.hbm %s2, %s294
          %s297 = sshll.u32 %s284, 4
          %s298 = int_to_ptr.vmem [resolvable:$true] %s297
          %300 = dma.vmem_to_hbm [thread:$0]  %s298, 64, %s295, %s281
        $region40: #{tpu_custom_call.1} parent=23 // pred_fallthru
          _
      $region24: #{tpu_custom_call.1} parent=5 // pred_fallthru
        _
      %p301 = scmp.le.s32.totalorder 2, %s15
      // Predicated region
      $region41: #{tpu_custom_call.1} parent=5 // pred_check
        %p302 = pneg %p301
      $region42: #{tpu_custom_call.1} parent=5 // pred_check_branch
        %304 = sbr.rel (%p302) target = $region44
      $region43: #{tpu_custom_call.1} parent=5 // pred_region
        %s305 = ssub.s32 %s15, 2
        // Predicated region
        $region45: #{tpu_custom_call.1} parent=43 // pred_check
          %p306 = pneg %p84
        $region46: #{tpu_custom_call.1} parent=43 // pred_check_branch
          %308 = sbr.rel (%p306) target = $region48
        $region47: #{tpu_custom_call.1} parent=43 // pred_region
          %p309 = scmp.lt.s32.totalorder %s26, 1
          %s310 = scalar_select %p309, %s26, 1
          %s311 = smul.addr %s310, 4
          %s312 = scalar_lea.vmem %s1, %s311
        $region48: #{tpu_custom_call.1} parent=43 // pred_fallthru
          _
        // Predicated region
        $region49: #{tpu_custom_call.1} parent=43 // pred_check
          %p313 = pneg %p110
        $region50: #{tpu_custom_call.1} parent=43 // pred_check_branch
          %315 = sbr.rel (%p313) target = $region52
        $region51: #{tpu_custom_call.1} parent=43 // pred_region
          %s316 = sand.u32 %s95, 1
          %s317 = scalar_lea.sflag [#allocation4], %s316
          %s318 = sand.u32 %s95, 1
          %s319 = smul.addr %s318, 4
          %s320 = scalar_lea.vmem [#allocation5], %s319
          %321 = dma.done %s317, 64
        $region52: #{tpu_custom_call.1} parent=43 // pred_fallthru
          _
      $region44: #{tpu_custom_call.1} parent=5 // pred_fallthru
        _
    $region6: #{tpu_custom_call.1} parent=1 // loop_footer
      %s19 = sadd.s32 1, %s15
    $region7: #{tpu_custom_call.1} parent=1 // loop_footer_branch
      %14 = sbr.rel target = $region3
    $region8: #{tpu_custom_call.1} parent=1 // loop_exit
      _
    %322 = vsyncpa [#allocation3], 1
    %s323 = scalar_lea.sflag [#allocation3], 1
    %324 = vsyncpa %s323, 1
    %325 = vsyncpa [#allocation4], 1
    %s326 = scalar_lea.sflag [#allocation4], 1
    %327 = vsyncpa %s326, 1

</llo_original>
